<compile_context>
chip_gen: v6e
topology: v6e:2x2x1
jax: 0.10.0
libtpu: 0.0.40
codegen_flags: <defaults>
</compile_context>

<pallas_src>
import functools

import jax
import jax.numpy as jnp
from jax.experimental import pallas as pl
from jax.experimental.pallas import tpu as pltpu


_LANE = 128
_SUBLANE = 8
_PAD_DIST = 1e30  # sentinel distance for padded codebook columns


def _round_up(x, m):
    return ((x + m - 1) // m) * m


def _codebook_kernel(n_valid, z_ref, e_ref, esq_ref, zq_ref, idx_ref, sse_ref):
    # z_ref:   (TN, D)   f32 tile of flattened latents
    # e_ref:   (Kp, D)   f32 codebook (loop-invariant, single copy in VMEM)
    # esq_ref: (1, Kp)   f32 ||e||^2, padded columns set to a huge value
    # zq_ref:  (TN, D)   f32 quantized output tile
    # idx_ref: (TN/128, 128) i32 lane-dense code indices
    # sse_ref: (8, 128)  f32 per-tile partial SSE (value at [0,0], zeros else)
    z = z_ref[...]
    e = e_ref[...]
    esq = esq_ref[...]

    tn, _ = z.shape
    kp = e.shape[0]

    # Distances up to the per-row constant ||z||^2 (irrelevant for argmin).
    # dot_general contracts z (TN,D) with e (Kp,D) along D -> (TN, Kp) on MXU;
    # avoids shipping a second, transposed copy of the codebook.
    cross = jax.lax.dot_general(
        z, e, (((1,), (1,)), ((), ())), preferred_element_type=jnp.float32)
    dist = esq - 2.0 * cross                                      # (TN, Kp) VPU

    idx = jnp.argmin(dist, axis=1).astype(jnp.int32)              # (TN,) XLU
    idx_ref[...] = idx.reshape(idx_ref.shape)                     # lane-dense

    # Gather codebook rows via one-hot matmul (MXU-friendly, no dynamic gather).
    cols = jax.lax.broadcasted_iota(jnp.int32, (tn, kp), 1)
    one_hot = (cols == idx[:, None]).astype(jnp.float32)
    z_q = jnp.dot(one_hot, e, preferred_element_type=jnp.float32)  # (TN, D)
    zq_ref[...] = z_q

    # Per-tile partial SSE; mask rows beyond the true N (tail padding), since
    # padded z rows are zero but their quantized codes are not.
    row = pl.program_id(0) * tn + jax.lax.broadcasted_iota(jnp.int32, (tn, 1), 0)
    valid = (row < n_valid).astype(jnp.float32)
    diff = (z_q - z) * valid
    sse = jnp.sum(diff * diff)

    r = jax.lax.broadcasted_iota(jnp.int32, sse_ref.shape, 0)
    c = jax.lax.broadcasted_iota(jnp.int32, sse_ref.shape, 1)
    sse_ref[...] = jnp.where((r == 0) & (c == 0), sse, 0.0)


def codebook_forward(z, embedding, beta, *, tile_n=1024):
    """Pallas Codebook forward.

    Args:
      z:         (..., D) latents (e.g. (B, H, W, D) channels-last).
      embedding: (K, D)   codebook weights.
      beta:      commitment loss weight.
    Returns:
      (z_q, min_encoding_indices, loss) matching the PyTorch forward.
    """
    k, d_lat = embedding.shape
    z_flat = z.reshape(-1, d_lat).astype(jnp.float32)
    n = z_flat.shape[0]

    # Tile sizing: multiple of 128 rows (lane-dense index output), no larger
    # than needed; when multi-tile, keep the index block 8-sublane aligned.
    tile_n = _round_up(min(tile_n, _round_up(n, _LANE)), _LANE)
    if _round_up(n, tile_n) // tile_n > 1:
        tile_n = _round_up(tile_n, _SUBLANE * _LANE)
    n_pad = _round_up(n, tile_n)
    num_tiles = n_pad // tile_n
    rows_per_tile = tile_n // _LANE

    if n_pad != n:
        z_flat = jnp.pad(z_flat, ((0, n_pad - n), (0, 0)))

    # Pad the codebook along K to a full 128-lane width; padded entries get a
    # huge ||e||^2 so they can never win the argmin.
    kp = _round_up(k, _LANE)
    e_pad = jnp.pad(embedding.astype(jnp.float32), ((0, kp - k), (0, 0)))
    esq = jnp.sum(e_pad * e_pad, axis=1, keepdims=True).T            # (1, Kp)
    esq = jnp.where(jnp.arange(kp)[None, :] < k, esq, jnp.float32(_PAD_DIST))

    zq_flat, idx_packed, sse_part = pl.pallas_call(
        functools.partial(_codebook_kernel, n),
        grid_spec=pltpu.PrefetchScalarGridSpec(
            num_scalar_prefetch=0,
            grid=(num_tiles,),
            in_specs=[
                pl.BlockSpec((tile_n, d_lat), lambda i: (i, 0)),
                pl.BlockSpec((kp, d_lat), lambda i: (0, 0)),
                pl.BlockSpec((1, kp), lambda i: (0, 0)),
            ],
            out_specs=[
                pl.BlockSpec((tile_n, d_lat), lambda i: (i, 0)),
                pl.BlockSpec((rows_per_tile, _LANE), lambda i: (i, 0)),
                pl.BlockSpec((_SUBLANE, _LANE), lambda i: (i, 0)),
            ],
        ),
        out_shape=(
            jax.ShapeDtypeStruct((n_pad, d_lat), jnp.float32),
            jax.ShapeDtypeStruct((num_tiles * rows_per_tile, _LANE), jnp.int32),
            jax.ShapeDtypeStruct((num_tiles * _SUBLANE, _LANE), jnp.float32),
        ),
        compiler_params=pltpu.CompilerParams(
            dimension_semantics=("parallel",),       # tiles are independent
            vmem_limit_bytes=32 * 1024 * 1024,       # safe on v5e/v6e/v7x
        ),
    )(z_flat, e_pad, esq)

    sse = jnp.sum(sse_part)                          # per-tile partials -> total
    mse = sse / jnp.float32(n * d_lat)
    # mean((z_q.detach()-z)^2) + beta*mean((z_q-z.detach())^2): both terms have
    # the same forward value (detach only affects gradients).
    loss = mse + beta * mse

    min_encoding_indices = idx_packed.reshape(-1)[:n]
    # z_q = z + (z_q - z).detach()  -> numerically equal to z_q in the forward.
    z_q = zq_flat[:n].reshape(z.shape).astype(z.dtype)
    return z_q, min_encoding_indices, loss


def reference_forward(z, embedding, beta):
    d_lat = embedding.shape[1]
    z_flat = z.reshape(-1, d_lat)
    d = (
        jnp.sum(z_flat**2, axis=1, keepdims=True)
        + jnp.sum(embedding**2, axis=1)
        - 2.0 * z_flat @ embedding.T
    )
    idx = jnp.argmin(d, axis=1)
    z_q = embedding[idx].reshape(z.shape)
    loss = jnp.mean((z_q - z) ** 2) + beta * jnp.mean((z_q - z) ** 2)
    return z_q, idx, loss


if __name__ == "__main__":
    num_codebook_vectors = 64
    latent_dim = 32
    beta = 0.25

    key = jax.random.PRNGKey(0)
    k_emb, k_z = jax.random.split(key)

    # Deterministic init matching nn.Embedding(...).uniform_(-1/K, 1/K)
    embedding = jax.random.uniform(
        k_emb,
        (num_codebook_vectors, latent_dim),
        dtype=jnp.float32,
        minval=-1.0 / num_codebook_vectors,
        maxval=1.0 / num_codebook_vectors,
    )

    # Small latent map: (B, H, W, C) channels-last, C == latent_dim.
    z = jax.random.normal(k_z, (2, 8, 8, latent_dim), dtype=jnp.float32) * 0.02

    fwd = jax.jit(functools.partial(codebook_forward, beta=beta))
    z_q, indices, loss = fwd(z, embedding)
    jax.block_until_ready((z_q, indices, loss))

    # Check against a plain-JAX reference.
    z_q_ref, idx_ref, loss_ref = reference_forward(z, embedding, beta)
    assert jnp.all(indices == idx_ref), "index mismatch"
    assert jnp.allclose(z_q, z_q_ref, atol=1e-5, rtol=1e-5), "z_q mismatch"
    assert jnp.allclose(loss, loss_ref, atol=1e-6, rtol=1e-5), "loss mismatch"

    print("KERNEL_OK")
</pallas_src>

<mosaic_0001>
module attributes {stable_mosaic.version = 11 : i64} {
  func.func @_codebook_kernel(%arg0: i32, %arg1: memref<128x32xf32, #tpu.memory_space<vmem>>, %arg2: memref<128x32xf32, #tpu.memory_space<vmem>>, %arg3: memref<1x128xf32, #tpu.memory_space<vmem>>, %arg4: memref<128x32xf32, #tpu.memory_space<vmem>>, %arg5: memref<1x128xi32, #tpu.memory_space<vmem>>, %arg6: memref<8x128xf32, #tpu.memory_space<vmem>>) attributes {dimension_semantics = [#tpu.dimension_semantics<parallel>], iteration_bounds = array<i64: 1>, scalar_prefetch = 0 : i64, scratch_operands = 0 : i64, tpu.core_type = #tpu.core_type<tc>, window_params = [{transform_indices = @transform_0, window_bounds = array<i64: 128, 32>}, {pipeline_mode = #tpu.pipeline_mode<synchronous>, transform_indices = @transform_1, window_bounds = array<i64: 128, 32>}, {pipeline_mode = #tpu.pipeline_mode<synchronous>, transform_indices = @transform_2, window_bounds = array<i64: 1, 128>}, {transform_indices = @transform_3, window_bounds = array<i64: 128, 32>}, {transform_indices = @transform_4, window_bounds = array<i64: 1, 128>}, {transform_indices = @transform_5, window_bounds = array<i64: 8, 128>}]} {
    %c0 = arith.constant 0 : index
    %c0_0 = arith.constant 0 : index
    %0 = vector.load %arg1[%c0, %c0_0] : memref<128x32xf32, #tpu.memory_space<vmem>>, vector<128x32xf32>
    %c0_1 = arith.constant 0 : index
    %c0_2 = arith.constant 0 : index
    %1 = vector.load %arg2[%c0_1, %c0_2] : memref<128x32xf32, #tpu.memory_space<vmem>>, vector<128x32xf32>
    %c0_3 = arith.constant 0 : index
    %c0_4 = arith.constant 0 : index
    %2 = vector.load %arg3[%c0_3, %c0_4] : memref<1x128xf32, #tpu.memory_space<vmem>>, vector<1x128xf32>
    %cst = arith.constant dense<0.000000e+00> : vector<128x128xf32>
    %3 = tpu.matmul %0, %1, %cst {dimension_numbers = #tpu.dot_dimension_numbers<[1], [1], [0], [0], [0, 0, 1, 0], [], []>} : vector<128x32xf32>, vector<128x32xf32>, vector<128x128xf32> -> vector<128x128xf32>
    %cst_5 = arith.constant 2.000000e+00 : f32
    %4 = vector.broadcast %cst_5 : f32 to vector<128x128xf32>
    %5 = arith.mulf %4, %3 : vector<128x128xf32>
    %6 = vector.broadcast %2 : vector<1x128xf32> to vector<128x128xf32>
    %7 = arith.subf %6, %5 : vector<128x128xf32>
    %8 = tpu.reduce_index %7 {axis = 1 : i32, kind = #tpu.reduction_kind<arg_min>} : vector<128x128xf32> -> vector<128xi32>
    %9 = vector.shape_cast %8 : vector<128xi32> to vector<1x128xi32>
    %c0_6 = arith.constant 0 : index
    %c0_7 = arith.constant 0 : index
    %10 = vector.load %arg5[%c0_6, %c0_7] : memref<1x128xi32, #tpu.memory_space<vmem>>, vector<1x128xi32>
    tpu.vector_store %arg5[%c0_6, %c0_7], %9 {strides = array<i32>} : memref<1x128xi32, #tpu.memory_space<vmem>>, vector<1x128xi32>,
    %11 = tpu.iota {dimensions = array<i32: 1>} : vector<128x128xi32>
    %12 = vector.shape_cast %8 : vector<128xi32> to vector<128x1xi32>
    %13 = vector.broadcast %12 : vector<128x1xi32> to vector<128x128xi32>
    %14 = arith.cmpi eq, %11, %13 : vector<128x128xi32>
    %15 = arith.extui %14 : vector<128x128xi1> to vector<128x128xi32>
    %16 = arith.sitofp %15 : vector<128x128xi32> to vector<128x128xf32>
    %cst_8 = arith.constant dense<0.000000e+00> : vector<128x32xf32>
    %17 = tpu.matmul %16, %1, %cst_8 {dimension_numbers = #tpu.dot_dimension_numbers<[1], [0], [0], [1], [0, 0, 1, 1], [], []>} : vector<128x128xf32>, vector<128x32xf32>, vector<128x32xf32> -> vector<128x32xf32>
    %c0_9 = arith.constant 0 : index
    %c0_10 = arith.constant 0 : index
    %18 = vector.load %arg4[%c0_9, %c0_10] : memref<128x32xf32, #tpu.memory_space<vmem>>, vector<128x32xf32>
    tpu.vector_store %arg4[%c0_9, %c0_10], %17 {strides = array<i32>} : memref<128x32xf32, #tpu.memory_space<vmem>>, vector<128x32xf32>,
    %c128_i32 = arith.constant 128 : i32
    %19 = arith.muli %arg0, %c128_i32 : i32
    %20 = tpu.iota {dimensions = array<i32: 0>} : vector<128x1xi32>
    %21 = vector.broadcast %19 : i32 to vector<128x1xi32>
    %22 = arith.addi %21, %20 : vector<128x1xi32>
    %c128_i32_11 = arith.constant 128 : i32
    %23 = vector.broadcast %c128_i32_11 : i32 to vector<128x1xi32>
    %24 = arith.cmpi slt, %22, %23 : vector<128x1xi32>
    %25 = arith.extui %24 : vector<128x1xi1> to vector<128x1xi32>
    %26 = arith.sitofp %25 : vector<128x1xi32> to vector<128x1xf32>
    %27 = arith.subf %17, %0 : vector<128x32xf32>
    %28 = vector.broadcast %26 : vector<128x1xf32> to vector<128x32xf32>
    %29 = arith.mulf %27, %28 : vector<128x32xf32>
    %30 = arith.mulf %29, %29 : vector<128x32xf32>
    %31 = vector.shape_cast %30 : vector<128x32xf32> to vector<1x128x32xf32>
    %cst_12 = arith.constant dense<0.000000e+00> : vector<1xf32>
    %32 = vector.multi_reduction <add>, %31, %cst_12 [1, 2] : vector<1x128x32xf32> to vector<1xf32>
    %33 = vector.shape_cast %32 : vector<1xf32> to vector<1x1x1xf32>
    %34 = vector.extract %33[0, 0, 0] : f32 from vector<1x1x1xf32>
    %35 = tpu.iota {dimensions = array<i32: 0>} : vector<8x128xi32>
    %36 = tpu.iota {dimensions = array<i32: 1>} : vector<8x128xi32>
    %c0_i32 = arith.constant 0 : i32
    %37 = vector.broadcast %c0_i32 : i32 to vector<8x128xi32>
    %38 = arith.cmpi eq, %35, %37 : vector<8x128xi32>
    %c0_i32_13 = arith.constant 0 : i32
    %39 = vector.broadcast %c0_i32_13 : i32 to vector<8x128xi32>
    %40 = arith.cmpi eq, %36, %39 : vector<8x128xi32>
    %41 = arith.andi %38, %40 : vector<8x128xi1>
    %cst_14 = arith.constant 0.000000e+00 : f32
    %42 = vector.broadcast %34 : f32 to vector<8x128xf32>
    %43 = vector.broadcast %cst_14 : f32 to vector<8x128xf32>
    %44 = arith.select %41, %42, %43 : vector<8x128xi1>, vector<8x128xf32>
    %c0_15 = arith.constant 0 : index
    %c0_16 = arith.constant 0 : index
    %45 = vector.load %arg6[%c0_15, %c0_16] : memref<8x128xf32, #tpu.memory_space<vmem>>, vector<8x128xf32>
    tpu.vector_store %arg6[%c0_15, %c0_16], %44 {strides = array<i32>} : memref<8x128xf32, #tpu.memory_space<vmem>>, vector<8x128xf32>,
    return
  }
  func.func @transform_0(%arg0: i32) -> (i32, i32) {
    %c0_i32 = arith.constant 0 : i32
    %c0_i32_0 = arith.constant 0 : i32
    return %arg0, %c0_i32 : i32, i32
  }
  func.func @transform_1(%arg0: i32) -> (i32, i32) {
    %c0_i32 = arith.constant 0 : i32
    %c0_i32_0 = arith.constant 0 : i32
    %c0_i32_1 = arith.constant 0 : i32
    return %c0_i32, %c0_i32_0 : i32, i32
  }
  func.func @transform_2(%arg0: i32) -> (i32, i32) {
    %c0_i32 = arith.constant 0 : i32
    %c0_i32_0 = arith.constant 0 : i32
    %c0_i32_1 = arith.constant 0 : i32
    return %c0_i32, %c0_i32_0 : i32, i32
  }
  func.func @transform_3(%arg0: i32) -> (i32, i32) {
    %c0_i32 = arith.constant 0 : i32
    %c0_i32_0 = arith.constant 0 : i32
    return %arg0, %c0_i32 : i32, i32
  }
  func.func @transform_4(%arg0: i32) -> (i32, i32) {
    %c0_i32 = arith.constant 0 : i32
    %c0_i32_0 = arith.constant 0 : i32
    return %arg0, %c0_i32 : i32, i32
  }
  func.func @transform_5(%arg0: i32) -> (i32, i32) {
    %c0_i32 = arith.constant 0 : i32
    %c0_i32_0 = arith.constant 0 : i32
    return %arg0, %c0_i32 : i32, i32
  }
}

</mosaic_0001>

<llo_original>
// kernel: codebook_forward.1
$region0: #{codebook_forward.1}
  #allocation0 [shape = 'u32[]', space=smem, size = 0x4, offset = 0x4, fixed_abs, tag = 'smem constant byte address 0x4 - core index']
  #allocation1 [shape = 'u32[144,128]{1,0:T(1,128)}', space=vmem, size = 0x12000, scoped, tag = 'internal scratch']
  %s0 = inlined_call_operand.vmem [shape: f32[128,32], index: 0, kind: input, shape index: {}]
  %s1 = inlined_call_operand.vmem [shape: f32[128,32], index: 1, kind: input, shape index: {}]
  %s2 = inlined_call_operand.vmem [shape: f32[1,128], index: 2, kind: input, shape index: {}]
  %s3 = inlined_call_operand.hbm [shape: f32[128,32], index: 3, kind: output, shape index: {0}]
  %s4 = inlined_call_operand.hbm [shape: s32[1,128], index: 4, kind: output, shape index: {1}]
  %s5 = inlined_call_operand.vmem [shape: f32[8,128], index: 5, kind: output, shape index: {2}]
  %6 = xla_tuple %s3, %s4, %s5
  %s7 = sld [smem:[#allocation0]]
  $region38: #{codebook_forward.1} parent=0
    _
  %s9 = ssub.s32 1, %s7
  %s10 = scalar_select 0, %s9, %s7
  $region1: #{codebook_forward.1} parent=0
    #allocation2 [shape = 'u8[65536]{0}', space=vmem, size = 0x10000, scoped, tag = 'output window, operand 0, single buffered']
    #allocation3 [shape = 's32[1]{0}', space=sflag, size = 0x4, scoped, tag = 'scoped memory for codebook_forward.1']
    #allocation4 [shape = 'u8[512]{0}', space=vmem, size = 0x400, scoped, tag = 'output window, operand 1, single buffered']
    #allocation5 [shape = 's32[1]{0}', space=sflag, size = 0x4, scoped, tag = 'scoped memory for codebook_forward.1']
    %11 = vsyncpa [#allocation3], 0
    %12 = vsyncpa [#allocation5], 0
    // Predicated region
    $region2: #{codebook_forward.1} parent=1 // pred_check
      _
    $region3: #{codebook_forward.1} parent=1 // pred_check_branch
      %14 = sbr.rel (0) target = $region5
    $region4: #{codebook_forward.1} parent=1 // pred_region
      _
    $region5: #{codebook_forward.1} parent=1 // pred_fallthru
      _
    // Predicated region
    $region6: #{codebook_forward.1} parent=1 // pred_check
      _
    $region7: #{codebook_forward.1} parent=1 // pred_check_branch
      %16 = sbr.rel (0) target = $region9
    $region8: #{codebook_forward.1} parent=1 // pred_region
      _
    $region9: #{codebook_forward.1} parent=1 // pred_fallthru
      _
    // Predicated region
    $region10: #{codebook_forward.1} parent=1 // pred_check
      _
    $region11: #{codebook_forward.1} parent=1 // pred_check_branch
      %18 = sbr.rel (0) target = $region13
    $region12: #{codebook_forward.1} parent=1 // pred_region
      _
    $region13: #{codebook_forward.1} parent=1 // pred_fallthru
      _
    %v19 = vld [vmem:[%s0] sm:$0xff]
    %v20 = vld [vmem:[%s0 + $0x8] sm:$0xff]
    %v21 = vld [vmem:[%s0 + $0x10] sm:$0xff]
    %v22 = vld [vmem:[%s0 + $0x18] sm:$0xff]
    %v23 = vld [vmem:[%s0 + $0x20] sm:$0xff]
    %v24 = vld [vmem:[%s0 + $0x28] sm:$0xff]
    %v25 = vld [vmem:[%s0 + $0x30] sm:$0xff]
    %v26 = vld [vmem:[%s0 + $0x38] sm:$0xff]
    %v27 = vld [vmem:[%s0 + $0x40] sm:$0xff]
    %v28 = vld [vmem:[%s0 + $0x48] sm:$0xff]
    %v29 = vld [vmem:[%s0 + $0x50] sm:$0xff]
    %v30 = vld [vmem:[%s0 + $0x58] sm:$0xff]
    %v31 = vld [vmem:[%s0 + $0x60] sm:$0xff]
    %v32 = vld [vmem:[%s0 + $0x68] sm:$0xff]
    %v33 = vld [vmem:[%s0 + $0x70] sm:$0xff]
    %v34 = vld [vmem:[%s0 + $0x78] sm:$0xff]
    %v35 = vld [vmem:[%s1] sm:$0xff]
    %v36 = vld [vmem:[%s1 + $0x8] sm:$0xff]
    %v37 = vld [vmem:[%s1 + $0x10] sm:$0xff]
    %v38 = vld [vmem:[%s1 + $0x18] sm:$0xff]
    %v39 = vld [vmem:[%s1 + $0x20] sm:$0xff]
    %v40 = vld [vmem:[%s1 + $0x28] sm:$0xff]
    %v41 = vld [vmem:[%s1 + $0x30] sm:$0xff]
    %v42 = vld [vmem:[%s1 + $0x38] sm:$0xff]
    %v43 = vld [vmem:[%s1 + $0x40] sm:$0xff]
    %v44 = vld [vmem:[%s1 + $0x48] sm:$0xff]
    %v45 = vld [vmem:[%s1 + $0x50] sm:$0xff]
    %v46 = vld [vmem:[%s1 + $0x58] sm:$0xff]
    %v47 = vld [vmem:[%s1 + $0x60] sm:$0xff]
    %v48 = vld [vmem:[%s1 + $0x68] sm:$0xff]
    %v49 = vld [vmem:[%s1 + $0x70] sm:$0xff]
    %v50 = vld [vmem:[%s1 + $0x78] sm:$0xff]
    %v51 = vld [vmem:[%s2] sm:$0x1]
    %vm52 = vcmask 261120
    %v54 = vsel %vm52, %v19, 0
    %v57 = vsel %vm52, %v20, 0
    %v60 = vsel %vm52, %v21, 0
    %v63 = vsel %vm52, %v22, 0
    %v66 = vsel %vm52, %v23, 0
    %v69 = vsel %vm52, %v24, 0
    %v72 = vsel %vm52, %v25, 0
    %v75 = vsel %vm52, %v26, 0
    %v78 = vsel %vm52, %v27, 0
    %v81 = vsel %vm52, %v28, 0
    %v84 = vsel %vm52, %v29, 0
    %v87 = vsel %vm52, %v30, 0
    %v90 = vsel %vm52, %v31, 0
    %v93 = vsel %vm52, %v32, 0
    %v96 = vsel %vm52, %v33, 0
    %v99 = vsel %vm52, %v34, 0
    %v102 = vsel %vm52, %v35, 0
    %v105 = vsel %vm52, %v36, 0
    %v108 = vsel %vm52, %v37, 0
    %v111 = vsel %vm52, %v38, 0
    %v114 = vsel %vm52, %v39, 0
    %v117 = vsel %vm52, %v40, 0
    %v120 = vsel %vm52, %v41, 0
    %v123 = vsel %vm52, %v42, 0
    %v126 = vsel %vm52, %v43, 0
    %v129 = vsel %vm52, %v44, 0
    %v132 = vsel %vm52, %v45, 0
    %v135 = vsel %vm52, %v46, 0
    %v138 = vsel %vm52, %v47, 0
    %v141 = vsel %vm52, %v48, 0
    %v144 = vsel %vm52, %v49, 0
    %v147 = vsel %vm52, %v50, 0
    %149 = vmatprep.subr.mxu0 0.0
    %150 = vmatpush1.xpose.msra.mxu0 %v147
    %151 = vmatprep.subr.mxu0 0.0
    %152 = vmatpush1.xpose.msra.mxu0 %v144
    %153 = vmatprep.subr.mxu0 0.0
    %154 = vmatpush1.xpose.msra.mxu0 %v141
    %155 = vmatprep.subr.mxu0 0.0
    %156 = vmatpush1.xpose.msra.mxu0 %v138
    %157 = vmatprep.subr.mxu0 0.0
    %158 = vmatpush1.xpose.msra.mxu0 %v135
    %159 = vmatprep.subr.mxu0 0.0
    %160 = vmatpush1.xpose.msra.mxu0 %v132
    %161 = vmatprep.subr.mxu0 0.0
    %162 = vmatpush1.xpose.msra.mxu0 %v129
    %163 = vmatprep.subr.mxu0 0.0
    %164 = vmatpush1.xpose.msra.mxu0 %v126
    %165 = vmatprep.subr.mxu0 0.0
    %166 = vmatpush1.xpose.msra.mxu0 %v123
    %167 = vmatprep.subr.mxu0 0.0
    %168 = vmatpush1.xpose.msra.mxu0 %v120
    %169 = vmatprep.subr.mxu0 0.0
    %170 = vmatpush1.xpose.msra.mxu0 %v117
    %171 = vmatprep.subr.mxu0 0.0
    %172 = vmatpush1.xpose.msra.mxu0 %v114
    %173 = vmatprep.subr.mxu0 0.0
    %174 = vmatpush1.xpose.msra.mxu0 %v111
    %175 = vmatprep.subr.mxu0 0.0
    %176 = vmatpush1.xpose.msra.mxu0 %v108
    %177 = vmatprep.subr.mxu0 0.0
    %178 = vmatpush1.xpose.msra.mxu0 %v105
    %179 = vmatprep.subr.mxu0 0.0
    %180 = vmatpush1.xpose.msra.mxu0 %v102
    %181 = vmatprep.subr.mxu0 0.0
    %182 = vmatpush2.xpose.msra.mxu0 0.0
    %183 = vmatprep.subr.mxu0 0.0
    %184 = vmatpush2.xpose.msra.mxu0 0.0
    %185 = vmatprep.subr.mxu0 0.0
    %186 = vmatpush2.xpose.msra.mxu0 0.0
    %187 = vmatprep.subr.mxu0 0.0
    %188 = vmatpush2.xpose.msra.mxu0 0.0
    %189 = vmatprep.subr.mxu0 0.0
    %190 = vmatpush2.xpose.msra.mxu0 0.0
    %191 = vmatprep.subr.mxu0 0.0
    %192 = vmatpush2.xpose.msra.mxu0 0.0
    %193 = vmatprep.subr.mxu0 0.0
    %194 = vmatpush2.xpose.msra.mxu0 0.0
    %195 = vmatprep.subr.mxu0 0.0
    %196 = vmatpush2.xpose.msra.mxu0 0.0
    %197 = vmatprep.subr.mxu0 0.0
    %198 = vmatpush2.xpose.msra.mxu0 0.0
    %199 = vmatprep.subr.mxu0 0.0
    %200 = vmatpush2.xpose.msra.mxu0 0.0
    %201 = vmatprep.subr.mxu0 0.0
    %202 = vmatpush2.xpose.msra.mxu0 0.0
    %203 = vmatprep.subr.mxu0 0.0
    %204 = vmatpush2.xpose.msra.mxu0 0.0
    %205 = vmatprep.subr.mxu0 0.0
    %206 = vmatpush2.xpose.msra.mxu0 0.0
    %207 = vmatprep.subr.mxu0 0.0
    %208 = vmatpush2.xpose.msra.mxu0 0.0
    %209 = vmatprep.subr.mxu0 0.0
    %210 = vmatpush2.xpose.msra.mxu0 0.0
    %211 = vmatprep.subr.mxu0 0.0
    %212 = vmatpush2.xpose.msra.mxu0 0.0
    %213 = vmatprep.mubr.f32.mxu0 0.0
    %214 = vmatmul.mubr.f32.gmra.mxu0 %v54
    %v215 = vpop.f32.mrf.mxu0
    %v216 = vadd.f32 0.0, %v215
    %v217 = vpop.f32.mrf.mxu0
    %218 = vmatprep.mubr.f32.mxu0 0.0
    %219 = vmatmul.mubr.f32.gmra.mxu0 %v57
    %v220 = vpop.f32.mrf.mxu0
    %v221 = vadd.f32 0.0, %v220
    %v222 = vpop.f32.mrf.mxu0
    %223 = vmatprep.mubr.f32.mxu0 0.0
    %224 = vmatmul.mubr.f32.gmra.mxu0 %v60
    %v225 = vpop.f32.mrf.mxu0
    %v226 = vadd.f32 0.0, %v225
    %v227 = vpop.f32.mrf.mxu0
    %228 = vmatprep.mubr.f32.mxu0 0.0
    %229 = vmatmul.mubr.f32.gmra.mxu0 %v63
    %v230 = vpop.f32.mrf.mxu0
    %v231 = vadd.f32 0.0, %v230
    %v232 = vpop.f32.mrf.mxu0
    %233 = vmatprep.mubr.f32.mxu0 0.0
    %234 = vmatmul.mubr.f32.gmra.mxu0 %v66
    %v235 = vpop.f32.mrf.mxu0
    %v236 = vadd.f32 0.0, %v235
    %v237 = vpop.f32.mrf.mxu0
    %238 = vmatprep.mubr.f32.mxu0 0.0
    %239 = vmatmul.mubr.f32.gmra.mxu0 %v69
    %v240 = vpop.f32.mrf.mxu0
    %v241 = vadd.f32 0.0, %v240
    %v242 = vpop.f32.mrf.mxu0
    %243 = vmatprep.mubr.f32.mxu0 0.0
    %244 = vmatmul.mubr.f32.gmra.mxu0 %v72
    %v245 = vpop.f32.mrf.mxu0
    %v246 = vadd.f32 0.0, %v245
    %v247 = vpop.f32.mrf.mxu0
    %248 = vmatprep.mubr.f32.mxu0 0.0
    %249 = vmatmul.mubr.f32.gmra.mxu0 %v75
    %v250 = vpop.f32.mrf.mxu0
    %v251 = vadd.f32 0.0, %v250
    %v252 = vpop.f32.mrf.mxu0
    %253 = vmatprep.mubr.f32.mxu0 0.0
    %254 = vmatmul.mubr.f32.gmra.mxu0 %v78
    %v255 = vpop.f32.mrf.mxu0
    %v256 = vadd.f32 0.0, %v255
    %v257 = vpop.f32.mrf.mxu0
    %258 = vmatprep.mubr.f32.mxu0 0.0
    %259 = vmatmul.mubr.f32.gmra.mxu0 %v81
    %v260 = vpop.f32.mrf.mxu0
    %v261 = vadd.f32 0.0, %v260
    %v262 = vpop.f32.mrf.mxu0
    %263 = vmatprep.mubr.f32.mxu0 0.0
    %264 = vmatmul.mubr.f32.gmra.mxu0 %v84
    %v265 = vpop.f32.mrf.mxu0
    %v266 = vadd.f32 0.0, %v265
    %v267 = vpop.f32.mrf.mxu0
    %268 = vmatprep.mubr.f32.mxu0 0.0
    %269 = vmatmul.mubr.f32.gmra.mxu0 %v87
    %v270 = vpop.f32.mrf.mxu0
    %v271 = vadd.f32 0.0, %v270
    %v272 = vpop.f32.mrf.mxu0
    %273 = vmatprep.mubr.f32.mxu0 0.0
    %274 = vmatmul.mubr.f32.gmra.mxu0 %v90
    %v275 = vpop.f32.mrf.mxu0
    %v276 = vadd.f32 0.0, %v275
    %v277 = vpop.f32.mrf.mxu0
    %278 = vmatprep.mubr.f32.mxu0 0.0
    %279 = vmatmul.mubr.f32.gmra.mxu0 %v93
    %v280 = vpop.f32.mrf.mxu0
    %v281 = vadd.f32 0.0, %v280
    %v282 = vpop.f32.mrf.mxu0
    %283 = vmatprep.mubr.f32.mxu0 0.0
    %284 = vmatmul.mubr.f32.gmra.mxu0 %v96
    %v285 = vpop.f32.mrf.mxu0
    %v286 = vadd.f32 0.0, %v285
    %v287 = vpop.f32.mrf.mxu0
    %288 = vmatprep.mubr.f32.mxu0 0.0
    %289 = vmatmul.mubr.f32.gmra.mxu0 %v99
    %v290 = vpop.f32.mrf.mxu0
    %v291 = vadd.f32 0.0, %v290
    %v292 = vpop.f32.mrf.mxu0
    %293 = vdwg.mxu0
    %v294 = vmul.f32 %v216, 2.0
    %v295 = vmul.f32 %v221, 2.0
    %v296 = vmul.f32 %v226, 2.0
    %v297 = vmul.f32 %v231, 2.0
    %v298 = vmul.f32 %v236, 2.0
    %v299 = vmul.f32 %v241, 2.0
    %v300 = vmul.f32 %v246, 2.0
    %v301 = vmul.f32 %v251, 2.0
    %v302 = vmul.f32 %v256, 2.0
    %v303 = vmul.f32 %v261, 2.0
    %v304 = vmul.f32 %v266, 2.0
    %v305 = vmul.f32 %v271, 2.0
    %v306 = vmul.f32 %v276, 2.0
    %v307 = vmul.f32 %v281, 2.0
    %v308 = vmul.f32 %v286, 2.0
    %v309 = vmul.f32 %v291, 2.0
    %v311 = vlaneseq
    %v312 = vshrl.u32 %v311, 7
    %v313 = vsub.s32 0, %v312
    %v314 = vrot.slane %v51, %v313
    %v316 = vsub.f32 %v314, %v294
    %v317 = vsub.f32 %v314, %v295
    %v318 = vsub.f32 %v314, %v296
    %v319 = vsub.f32 %v314, %v297
    %v320 = vsub.f32 %v314, %v298
    %v321 = vsub.f32 %v314, %v299
    %v322 = vsub.f32 %v314, %v300
    %v323 = vsub.f32 %v314, %v301
    %v324 = vsub.f32 %v314, %v302
    %v325 = vsub.f32 %v314, %v303
    %v326 = vsub.f32 %v314, %v304
    %v327 = vsub.f32 %v314, %v305
    %v328 = vsub.f32 %v314, %v306
    %v329 = vsub.f32 %v314, %v307
    %v330 = vsub.f32 %v314, %v308
    %v331 = vsub.f32 %v314, %v309
    %332 = vmin.index.xlane.f32.xlu0 %v316
    %v333 = vpop.xlane.xlu0 %332
    %334 = vmin.index.xlane.f32.xlu0 %v317
    %v335 = vpop.xlane.xlu0 %334
    %336 = vmin.index.xlane.f32.xlu0 %v318
    %v337 = vpop.xlane.xlu0 %336
    %338 = vmin.index.xlane.f32.xlu0 %v319
    %v339 = vpop.xlane.xlu0 %338
    %340 = vmin.index.xlane.f32.xlu0 %v320
    %v341 = vpop.xlane.xlu0 %340
    %342 = vmin.index.xlane.f32.xlu0 %v321
    %v343 = vpop.xlane.xlu0 %342
    %344 = vmin.index.xlane.f32.xlu0 %v322
    %v345 = vpop.xlane.xlu0 %344
    %346 = vmin.index.xlane.f32.xlu0 %v323
    %v347 = vpop.xlane.xlu0 %346
    %348 = vmin.index.xlane.f32.xlu0 %v324
    %v349 = vpop.xlane.xlu0 %348
    %350 = vmin.index.xlane.f32.xlu0 %v325
    %v351 = vpop.xlane.xlu0 %350
    %352 = vmin.index.xlane.f32.xlu0 %v326
    %v353 = vpop.xlane.xlu0 %352
    %354 = vmin.index.xlane.f32.xlu0 %v327
    %v355 = vpop.xlane.xlu0 %354
    %356 = vmin.index.xlane.f32.xlu0 %v328
    %v357 = vpop.xlane.xlu0 %356
    %358 = vmin.index.xlane.f32.xlu0 %v329
    %v359 = vpop.xlane.xlu0 %358
    %360 = vmin.index.xlane.f32.xlu0 %v330
    %v361 = vpop.xlane.xlu0 %360
    %362 = vmin.index.xlane.f32.xlu0 %v331
    %v363 = vpop.xlane.xlu0 %362
    %v364 = vlaneseq
    %v365 = vand.u32 %v364, 127
    %v366 = vlaneseq
    %v367 = vshrl.u32 %v366, 7
    %v368 = vsub.s32 %v365, %v367
    %v369 = vrot.slane %v333, %v368
    %v370 = vadd.s32 %v365, 4294967288
    %v371 = vlaneseq
    %v372 = vshrl.u32 %v371, 7
    %v373 = vsub.s32 %v370, %v372
    %v374 = vrot.slane %v335, %v373
    %vm375 = vcmask 130112
    %v376 = vsel %vm375, %v374, %v369
    %v377 = vadd.s32 %v365, 4294967280
    %v378 = vlaneseq
    %v379 = vshrl.u32 %v378, 7
    %v380 = vsub.s32 %v377, %v379
    %v381 = vrot.slane %v337, %v380
    %vm382 = vcmask 195712
    %v383 = vsel %vm382, %v381, %v376
    %v384 = vadd.s32 %v365, 4294967272
    %v385 = vlaneseq
    %v386 = vshrl.u32 %v385, 7
    %v387 = vsub.s32 %v384, %v386
    %v388 = vrot.slane %v339, %v387
    %vm389 = vcmask 261312
    %v390 = vsel %vm389, %v388, %v383
    %v391 = vadd.s32 %v365, 4294967264
    %v392 = vlaneseq
    %v393 = vshrl.u32 %v392, 7
    %v394 = vsub.s32 %v391, %v393
    %v395 = vrot.slane %v341, %v394
    %vm396 = vcmask 326912
    %v397 = vsel %vm396, %v395, %v390
    %v398 = vadd.s32 %v365, 4294967256
    %v399 = vlaneseq
    %v400 = vshrl.u32 %v399, 7
    %v401 = vsub.s32 %v398, %v400
    %v402 = vrot.slane %v343, %v401
    %vm403 = vcmask 392512
    %v404 = vsel %vm403, %v402, %v397
    %v405 = vadd.s32 %v365, 4294967248
    %v406 = vlaneseq
    %v407 = vshrl.u32 %v406, 7
    %v408 = vsub.s32 %v405, %v407
    %v409 = vrot.slane %v345, %v408
    %vm410 = vcmask 458112
    %v411 = vsel %vm410, %v409, %v404
    %v412 = vadd.s32 %v365, 4294967240
    %v413 = vlaneseq
    %v414 = vshrl.u32 %v413, 7
    %v415 = vsub.s32 %v412, %v414
    %v416 = vrot.slane %v347, %v415
    %vm417 = vcmask 523712
    %v418 = vsel %vm417, %v416, %v411
    %v419 = vadd.s32 %v365, 4294967232
    %v420 = vlaneseq
    %v421 = vshrl.u32 %v420, 7
    %v422 = vsub.s32 %v419, %v421
    %v423 = vrot.slane %v349, %v422
    %vm424 = vcmask 589312
    %v425 = vsel %vm424, %v423, %v418
    %v426 = vadd.s32 %v365, 4294967224
    %v427 = vlaneseq
    %v428 = vshrl.u32 %v427, 7
    %v429 = vsub.s32 %v426, %v428
    %v430 = vrot.slane %v351, %v429
    %vm431 = vcmask 654912
    %v432 = vsel %vm431, %v430, %v425
    %v433 = vadd.s32 %v365, 4294967216
    %v434 = vlaneseq
    %v435 = vshrl.u32 %v434, 7
    %v436 = vsub.s32 %v433, %v435
    %v437 = vrot.slane %v353, %v436
    %vm438 = vcmask 720512
    %v439 = vsel %vm438, %v437, %v432
    %v440 = vadd.s32 %v365, 4294967208
    %v441 = vlaneseq
    %v442 = vshrl.u32 %v441, 7
    %v443 = vsub.s32 %v440, %v442
    %v444 = vrot.slane %v355, %v443
    %vm445 = vcmask 786112
    %v446 = vsel %vm445, %v444, %v439
    %v447 = vadd.s32 %v365, 4294967200
    %v448 = vlaneseq
    %v449 = vshrl.u32 %v448, 7
    %v450 = vsub.s32 %v447, %v449
    %v451 = vrot.slane %v357, %v450
    %vm452 = vcmask 851712
    %v453 = vsel %vm452, %v451, %v446
    %v454 = vadd.s32 %v365, 4294967192
    %v455 = vlaneseq
    %v456 = vshrl.u32 %v455, 7
    %v457 = vsub.s32 %v454, %v456
    %v458 = vrot.slane %v359, %v457
    %vm459 = vcmask 917312
    %v460 = vsel %vm459, %v458, %v453
    %v461 = vadd.s32 %v365, 4294967184
    %v462 = vlaneseq
    %v463 = vshrl.u32 %v462, 7
    %v464 = vsub.s32 %v461, %v463
    %v465 = vrot.slane %v361, %v464
    %vm466 = vcmask 982912
    %v467 = vsel %vm466, %v465, %v460
    %v468 = vadd.s32 %v365, 4294967176
    %v469 = vlaneseq
    %v470 = vshrl.u32 %v469, 7
    %v471 = vsub.s32 %v468, %v470
    %v472 = vrot.slane %v363, %v471
    %vm473 = vcmask 1048512
    %v474 = vsel %vm473, %v472, %v467
    %475 = vst [vmem:[#allocation4] sm:$0x1] %v474
    %vm476 = vcmp.eq.s32.totalorder %v365, %v333
    %vm477 = vcmp.eq.s32.totalorder %v365, %v335
    %vm478 = vcmp.eq.s32.totalorder %v365, %v337
    %vm479 = vcmp.eq.s32.totalorder %v365, %v339
    %vm480 = vcmp.eq.s32.totalorder %v365, %v341
    %vm481 = vcmp.eq.s32.totalorder %v365, %v343
    %vm482 = vcmp.eq.s32.totalorder %v365, %v345
    %vm483 = vcmp.eq.s32.totalorder %v365, %v347
    %vm484 = vcmp.eq.s32.totalorder %v365, %v349
    %vm485 = vcmp.eq.s32.totalorder %v365, %v351
    %vm486 = vcmp.eq.s32.totalorder %v365, %v353
    %vm487 = vcmp.eq.s32.totalorder %v365, %v355
    %vm488 = vcmp.eq.s32.totalorder %v365, %v357
    %vm489 = vcmp.eq.s32.totalorder %v365, %v359
    %vm490 = vcmp.eq.s32.totalorder %v365, %v361
    %vm491 = vcmp.eq.s32.totalorder %v365, %v363
    %v492 = vsel %vm476, 1, 0
    %v493 = vsel %vm477, 1, 0
    %v494 = vsel %vm478, 1, 0
    %v495 = vsel %vm479, 1, 0
    %v496 = vsel %vm480, 1, 0
    %v497 = vsel %vm481, 1, 0
    %v498 = vsel %vm482, 1, 0
    %v499 = vsel %vm483, 1, 0
    %v500 = vsel %vm484, 1, 0
    %v501 = vsel %vm485, 1, 0
    %v502 = vsel %vm486, 1, 0
    %v503 = vsel %vm487, 1, 0
    %v504 = vsel %vm488, 1, 0
    %v505 = vsel %vm489, 1, 0
    %v506 = vsel %vm490, 1, 0
    %v507 = vsel %vm491, 1, 0
    %v508 = vcvt.s32.f32 %v492
    %v509 = vcvt.s32.f32 %v493
    %v510 = vcvt.s32.f32 %v494
    %v511 = vcvt.s32.f32 %v495
    %v512 = vcvt.s32.f32 %v496
    %v513 = vcvt.s32.f32 %v497
    %v514 = vcvt.s32.f32 %v498
    %v515 = vcvt.s32.f32 %v499
    %v516 = vcvt.s32.f32 %v500
    %v517 = vcvt.s32.f32 %v501
    %v518 = vcvt.s32.f32 %v502
    %v519 = vcvt.s32.f32 %v503
    %v520 = vcvt.s32.f32 %v504
    %v521 = vcvt.s32.f32 %v505
    %v522 = vcvt.s32.f32 %v506
    %v523 = vcvt.s32.f32 %v507
    %524 = vmatprep.subr.mxu0 0.0
    %525 = vmatpush1.msra.mxu0 %v50
    %526 = vmatprep.subr.mxu0 0.0
    %527 = vmatpush1.msra.mxu0 %v49
    %528 = vmatprep.subr.mxu0 0.0
    %529 = vmatpush1.msra.mxu0 %v48
    %530 = vmatprep.subr.mxu0 0.0
    %531 = vmatpush1.msra.mxu0 %v47
    %532 = vmatprep.subr.mxu0 0.0
    %533 = vmatpush1.msra.mxu0 %v46
    %534 = vmatprep.subr.mxu0 0.0
    %535 = vmatpush1.msra.mxu0 %v45
    %536 = vmatprep.subr.mxu0 0.0
    %537 = vmatpush1.msra.mxu0 %v44
    %538 = vmatprep.subr.mxu0 0.0
    %539 = vmatpush1.msra.mxu0 %v43
    %540 = vmatprep.subr.mxu0 0.0
    %541 = vmatpush1.msra.mxu0 %v42
    %542 = vmatprep.subr.mxu0 0.0
    %543 = vmatpush1.msra.mxu0 %v41
    %544 = vmatprep.subr.mxu0 0.0
    %545 = vmatpush1.msra.mxu0 %v40
    %546 = vmatprep.subr.mxu0 0.0
    %547 = vmatpush1.msra.mxu0 %v39
    %548 = vmatprep.subr.mxu0 0.0
    %549 = vmatpush1.msra.mxu0 %v38
    %550 = vmatprep.subr.mxu0 0.0
    %551 = vmatpush1.msra.mxu0 %v37
    %552 = vmatprep.subr.mxu0 0.0
    %553 = vmatpush1.msra.mxu0 %v36
    %554 = vmatprep.subr.mxu0 0.0
    %555 = vmatpush1.msra.mxu0 %v35
    %556 = vmatprep.subr.mxu0 0.0
    %557 = vmatpush2.msra.mxu0 0.0
    %558 = vmatprep.subr.mxu0 0.0
    %559 = vmatpush2.msra.mxu0 0.0
    %560 = vmatprep.subr.mxu0 0.0
    %561 = vmatpush2.msra.mxu0 0.0
    %562 = vmatprep.subr.mxu0 0.0
    %563 = vmatpush2.msra.mxu0 0.0
    %564 = vmatprep.subr.mxu0 0.0
    %565 = vmatpush2.msra.mxu0 0.0
    %566 = vmatprep.subr.mxu0 0.0
    %567 = vmatpush2.msra.mxu0 0.0
    %568 = vmatprep.subr.mxu0 0.0
    %569 = vmatpush2.msra.mxu0 0.0
    %570 = vmatprep.subr.mxu0 0.0
    %571 = vmatpush2.msra.mxu0 0.0
    %572 = vmatprep.subr.mxu0 0.0
    %573 = vmatpush2.msra.mxu0 0.0
    %574 = vmatprep.subr.mxu0 0.0
    %575 = vmatpush2.msra.mxu0 0.0
    %576 = vmatprep.subr.mxu0 0.0
    %577 = vmatpush2.msra.mxu0 0.0
    %578 = vmatprep.subr.mxu0 0.0
    %579 = vmatpush2.msra.mxu0 0.0
    %580 = vmatprep.subr.mxu0 0.0
    %581 = vmatpush2.msra.mxu0 0.0
    %582 = vmatprep.subr.mxu0 0.0
    %583 = vmatpush2.msra.mxu0 0.0
    %584 = vmatprep.subr.mxu0 0.0
    %585 = vmatpush2.msra.mxu0 0.0
    %586 = vmatprep.subr.mxu0 0.0
    %587 = vmatpush2.msra.mxu0 0.0
    %588 = vmatprep.mubr.f32.mxu0 0.0
    %589 = vmatmul.mubr.f32.gmra.mxu0 %v508
    %v590 = vpop.f32.mrf.mxu0
    %v591 = vadd.f32 0.0, %v590
    %v592 = vpop.f32.mrf.mxu0
    %593 = vmatprep.mubr.f32.mxu0 0.0
    %594 = vmatmul.mubr.f32.gmra.mxu0 %v509
    %v595 = vpop.f32.mrf.mxu0
    %v596 = vadd.f32 0.0, %v595
    %v597 = vpop.f32.mrf.mxu0
    %598 = vmatprep.mubr.f32.mxu0 0.0
    %599 = vmatmul.mubr.f32.gmra.mxu0 %v510
    %v600 = vpop.f32.mrf.mxu0
    %v601 = vadd.f32 0.0, %v600
    %v602 = vpop.f32.mrf.mxu0
    %603 = vmatprep.mubr.f32.mxu0 0.0
    %604 = vmatmul.mubr.f32.gmra.mxu0 %v511
    %v605 = vpop.f32.mrf.mxu0
    %v606 = vadd.f32 0.0, %v605
    %v607 = vpop.f32.mrf.mxu0
    %608 = vmatprep.mubr.f32.mxu0 0.0
    %609 = vmatmul.mubr.f32.gmra.mxu0 %v512
    %v610 = vpop.f32.mrf.mxu0
    %v611 = vadd.f32 0.0, %v610
    %v612 = vpop.f32.mrf.mxu0
    %613 = vmatprep.mubr.f32.mxu0 0.0
    %614 = vmatmul.mubr.f32.gmra.mxu0 %v513
    %v615 = vpop.f32.mrf.mxu0
    %v616 = vadd.f32 0.0, %v615
    %v617 = vpop.f32.mrf.mxu0
    %618 = vmatprep.mubr.f32.mxu0 0.0
    %619 = vmatmul.mubr.f32.gmra.mxu0 %v514
    %v620 = vpop.f32.mrf.mxu0
    %v621 = vadd.f32 0.0, %v620
    %v622 = vpop.f32.mrf.mxu0
    %623 = vmatprep.mubr.f32.mxu0 0.0
    %624 = vmatmul.mubr.f32.gmra.mxu0 %v515
    %v625 = vpop.f32.mrf.mxu0
    %v626 = vadd.f32 0.0, %v625
    %v627 = vpop.f32.mrf.mxu0
    %628 = vmatprep.mubr.f32.mxu0 0.0
    %629 = vmatmul.mubr.f32.gmra.mxu0 %v516
    %v630 = vpop.f32.mrf.mxu0
    %v631 = vadd.f32 0.0, %v630
    %v632 = vpop.f32.mrf.mxu0
    %633 = vmatprep.mubr.f32.mxu0 0.0
    %634 = vmatmul.mubr.f32.gmra.mxu0 %v517
    %v635 = vpop.f32.mrf.mxu0
    %v636 = vadd.f32 0.0, %v635
    %v637 = vpop.f32.mrf.mxu0
    %638 = vmatprep.mubr.f32.mxu0 0.0
    %639 = vmatmul.mubr.f32.gmra.mxu0 %v518
    %v640 = vpop.f32.mrf.mxu0
    %v641 = vadd.f32 0.0, %v640
    %v642 = vpop.f32.mrf.mxu0
    %643 = vmatprep.mubr.f32.mxu0 0.0
    %644 = vmatmul.mubr.f32.gmra.mxu0 %v519
    %v645 = vpop.f32.mrf.mxu0
    %v646 = vadd.f32 0.0, %v645
    %v647 = vpop.f32.mrf.mxu0
    %648 = vmatprep.mubr.f32.mxu0 0.0
    %649 = vmatmul.mubr.f32.gmra.mxu0 %v520
    %v650 = vpop.f32.mrf.mxu0
    %v651 = vadd.f32 0.0, %v650
    %v652 = vpop.f32.mrf.mxu0
    %653 = vmatprep.mubr.f32.mxu0 0.0
    %654 = vmatmul.mubr.f32.gmra.mxu0 %v521
    %v655 = vpop.f32.mrf.mxu0
    %v656 = vadd.f32 0.0, %v655
    %v657 = vpop.f32.mrf.mxu0
    %658 = vmatprep.mubr.f32.mxu0 0.0
    %659 = vmatmul.mubr.f32.gmra.mxu0 %v522
    %v660 = vpop.f32.mrf.mxu0
    %v661 = vadd.f32 0.0, %v660
    %v662 = vpop.f32.mrf.mxu0
    %663 = vmatprep.mubr.f32.mxu0 0.0
    %664 = vmatmul.mubr.f32.gmra.mxu0 %v523
    %v665 = vpop.f32.mrf.mxu0
    %v666 = vadd.f32 0.0, %v665
    %v667 = vpop.f32.mrf.mxu0
    %668 = vdwg.mxu0
    %669 = vst.msk [vmem:[#allocation2] sm:$0xff] %vm52, %v591
    %670 = vst.msk [vmem:[#allocation2 + $0x8] sm:$0xff] %vm52, %v596
    %671 = vst.msk [vmem:[#allocation2 + $0x10] sm:$0xff] %vm52, %v601
    %672 = vst.msk [vmem:[#allocation2 + $0x18] sm:$0xff] %vm52, %v606
    %673 = vst.msk [vmem:[#allocation2 + $0x20] sm:$0xff] %vm52, %v611
    %674 = vst.msk [vmem:[#allocation2 + $0x28] sm:$0xff] %vm52, %v616
    %675 = vst.msk [vmem:[#allocation2 + $0x30] sm:$0xff] %vm52, %v621
    %676 = vst.msk [vmem:[#allocation2 + $0x38] sm:$0xff] %vm52, %v626
    %677 = vst.msk [vmem:[#allocation2 + $0x40] sm:$0xff] %vm52, %v631
    %678 = vst.msk [vmem:[#allocation2 + $0x48] sm:$0xff] %vm52, %v636
    %679 = vst.msk [vmem:[#allocation2 + $0x50] sm:$0xff] %vm52, %v641
    %680 = vst.msk [vmem:[#allocation2 + $0x58] sm:$0xff] %vm52, %v646
    %681 = vst.msk [vmem:[#allocation2 + $0x60] sm:$0xff] %vm52, %v651
    %682 = vst.msk [vmem:[#allocation2 + $0x68] sm:$0xff] %vm52, %v656
    %683 = vst.msk [vmem:[#allocation2 + $0x70] sm:$0xff] %vm52, %v661
    %684 = vst.msk [vmem:[#allocation2 + $0x78] sm:$0xff] %vm52, %v666
    %s685 = smul.u32 0, 128
    %v686 = vlaneseq
    %v687 = vshrl.u32 %v686, 7
    %v688 = vadd.s32 %v687, 8
    %v689 = vadd.s32 %v687, 16
    %v690 = vadd.s32 %v687, 24
    %v691 = vadd.s32 %v687, 32
    %v692 = vadd.s32 %v687, 40
    %v693 = vadd.s32 %v687, 48
    %v694 = vadd.s32 %v687, 56
    %v695 = vadd.s32 %v687, 64
    %v696 = vadd.s32 %v687, 72
    %v697 = vadd.s32 %v687, 80
    %v698 = vadd.s32 %v687, 88
    %v699 = vadd.s32 %v687, 96
    %v700 = vadd.s32 %v687, 104
    %v701 = vadd.s32 %v687, 112
    %v702 = vadd.s32 %v687, 120
    %v703 = vstv %s685
    %v704 = vadd.s32 %v703, %v687
    %v705 = vadd.s32 %v703, %v688
    %v706 = vadd.s32 %v703, %v689
    %v707 = vadd.s32 %v703, %v690
    %v708 = vadd.s32 %v703, %v691
    %v709 = vadd.s32 %v703, %v692
    %v710 = vadd.s32 %v703, %v693
    %v711 = vadd.s32 %v703, %v694
    %v712 = vadd.s32 %v703, %v695
    %v713 = vadd.s32 %v703, %v696
    %v714 = vadd.s32 %v703, %v697
    %v715 = vadd.s32 %v703, %v698
    %v716 = vadd.s32 %v703, %v699
    %v717 = vadd.s32 %v703, %v700
    %v718 = vadd.s32 %v703, %v701
    %v719 = vadd.s32 %v703, %v702
    %vm720 = vcmp.lt.s32.totalorder %v704, 128
    %vm721 = vcmp.lt.s32.totalorder %v705, 128
    %vm722 = vcmp.lt.s32.totalorder %v706, 128
    %vm723 = vcmp.lt.s32.totalorder %v707, 128
    %vm724 = vcmp.lt.s32.totalorder %v708, 128
    %vm725 = vcmp.lt.s32.totalorder %v709, 128
    %vm726 = vcmp.lt.s32.totalorder %v710, 128
    %vm727 = vcmp.lt.s32.totalorder %v711, 128
    %vm728 = vcmp.lt.s32.totalorder %v712, 128
    %vm729 = vcmp.lt.s32.totalorder %v713, 128
    %vm730 = vcmp.lt.s32.totalorder %v714, 128
    %vm731 = vcmp.lt.s32.totalorder %v715, 128
    %vm732 = vcmp.lt.s32.totalorder %v716, 128
    %vm733 = vcmp.lt.s32.totalorder %v717, 128
    %vm734 = vcmp.lt.s32.totalorder %v718, 128
    %vm735 = vcmp.lt.s32.totalorder %v719, 128
    %v736 = vsel %vm720, 1, 0
    %v737 = vsel %vm721, 1, 0
    %v738 = vsel %vm722, 1, 0
    %v739 = vsel %vm723, 1, 0
    %v740 = vsel %vm724, 1, 0
    %v741 = vsel %vm725, 1, 0
    %v742 = vsel %vm726, 1, 0
    %v743 = vsel %vm727, 1, 0
    %v744 = vsel %vm728, 1, 0
    %v745 = vsel %vm729, 1, 0
    %v746 = vsel %vm730, 1, 0
    %v747 = vsel %vm731, 1, 0
    %v748 = vsel %vm732, 1, 0
    %v749 = vsel %vm733, 1, 0
    %v750 = vsel %vm734, 1, 0
    %v751 = vsel %vm735, 1, 0
    %v752 = vcvt.s32.f32 %v736
    %v753 = vcvt.s32.f32 %v737
    %v754 = vcvt.s32.f32 %v738
    %v755 = vcvt.s32.f32 %v739
    %v756 = vcvt.s32.f32 %v740
    %v757 = vcvt.s32.f32 %v741
    %v758 = vcvt.s32.f32 %v742
    %v759 = vcvt.s32.f32 %v743
    %v760 = vcvt.s32.f32 %v744
    %v761 = vcvt.s32.f32 %v745
    %v762 = vcvt.s32.f32 %v746
    %v763 = vcvt.s32.f32 %v747
    %v764 = vcvt.s32.f32 %v748
    %v765 = vcvt.s32.f32 %v749
    %v766 = vcvt.s32.f32 %v750
    %v767 = vcvt.s32.f32 %v751
    %v768 = vsub.f32 %v591, %v19
    %v769 = vsub.f32 %v596, %v20
    %v770 = vsub.f32 %v601, %v21
    %v771 = vsub.f32 %v606, %v22
    %v772 = vsub.f32 %v611, %v23
    %v773 = vsub.f32 %v616, %v24
    %v774 = vsub.f32 %v621, %v25
    %v775 = vsub.f32 %v626, %v26
    %v776 = vsub.f32 %v631, %v27
    %v777 = vsub.f32 %v636, %v28
    %v778 = vsub.f32 %v641, %v29
    %v779 = vsub.f32 %v646, %v30
    %v780 = vsub.f32 %v651, %v31
    %v781 = vsub.f32 %v656, %v32
    %v782 = vsub.f32 %v661, %v33
    %v783 = vsub.f32 %v666, %v34
    %v784 = vmul.f32 %v768, %v752
    %v785 = vmul.f32 %v769, %v753
    %v786 = vmul.f32 %v770, %v754
    %v787 = vmul.f32 %v771, %v755
    %v788 = vmul.f32 %v772, %v756
    %v789 = vmul.f32 %v773, %v757
    %v790 = vmul.f32 %v774, %v758
    %v791 = vmul.f32 %v775, %v759
    %v792 = vmul.f32 %v776, %v760
    %v793 = vmul.f32 %v777, %v761
    %v794 = vmul.f32 %v778, %v762
    %v795 = vmul.f32 %v779, %v763
    %v796 = vmul.f32 %v780, %v764
    %v797 = vmul.f32 %v781, %v765
    %v798 = vmul.f32 %v782, %v766
    %v799 = vmul.f32 %v783, %v767
    %v800 = vmul.f32 %v784, %v784
    %v801 = vmul.f32 %v785, %v785
    %v802 = vmul.f32 %v786, %v786
    %v803 = vmul.f32 %v787, %v787
    %v804 = vmul.f32 %v788, %v788
    %v805 = vmul.f32 %v789, %v789
    %v806 = vmul.f32 %v790, %v790
    %v807 = vmul.f32 %v791, %v791
    %v808 = vmul.f32 %v792, %v792
    %v809 = vmul.f32 %v793, %v793
    %v810 = vmul.f32 %v794, %v794
    %v811 = vmul.f32 %v795, %v795
    %v812 = vmul.f32 %v796, %v796
    %v813 = vmul.f32 %v797, %v797
    %v814 = vmul.f32 %v798, %v798
    %v815 = vmul.f32 %v799, %v799
    %v816 = vsel %vm52, %v800, 0.0
    %v817 = vsel %vm52, %v801, 0.0
    %v818 = vadd.f32 %v816, %v817
    %v819 = vsel %vm52, %v802, 0.0
    %v820 = vadd.f32 %v818, %v819
    %v821 = vsel %vm52, %v803, 0.0
    %v822 = vadd.f32 %v820, %v821
    %v823 = vsel %vm52, %v804, 0.0
    %v824 = vadd.f32 %v822, %v823
    %v825 = vsel %vm52, %v805, 0.0
    %v826 = vadd.f32 %v824, %v825
    %v827 = vsel %vm52, %v806, 0.0
    %v828 = vadd.f32 %v826, %v827
    %v829 = vsel %vm52, %v807, 0.0
    %v830 = vadd.f32 %v828, %v829
    %v831 = vsel %vm52, %v808, 0.0
    %v832 = vadd.f32 %v830, %v831
    %v833 = vsel %vm52, %v809, 0.0
    %v834 = vadd.f32 %v832, %v833
    %v835 = vsel %vm52, %v810, 0.0
    %v836 = vadd.f32 %v834, %v835
    %v837 = vsel %vm52, %v811, 0.0
    %v838 = vadd.f32 %v836, %v837
    %v839 = vsel %vm52, %v812, 0.0
    %v840 = vadd.f32 %v838, %v839
    %v841 = vsel %vm52, %v813, 0.0
    %v842 = vadd.f32 %v840, %v841
    %v843 = vsel %vm52, %v814, 0.0
    %v844 = vadd.f32 %v842, %v843
    %v845 = vsel %vm52, %v815, 0.0
    %v846 = vadd.f32 %v844, %v845
    %847 = vadd.xlane.f32.xlu0 %v846
    %v848 = vpop.xlane.xlu0 %847
    %v849 = vrot.slane %v848, 4
    %v850 = vadd.f32 %v848, %v849
    %v851 = vrot.slane %v850, 2
    %v852 = vadd.f32 %v850, %v851
    %v853 = vrot.slane %v852, 1
    %v854 = vadd.f32 %v852, %v853
    %s855 = vtos %v854
    %vm856 = vcmp.eq.s32.totalorder %v687, 0
    %vm857 = vcmp.eq.s32.totalorder %v365, 0
    %vm858 = vmand %vm856, %vm857
    %v859 = vstv %s855
    %v860 = vsel %vm858, %v859, 0.0
    %861 = vst [vmem:[%s5] sm:$0xff] %v860
    // Predicated region
    $region14: #{codebook_forward.1} parent=1 // pred_check
      _
    $region15: #{codebook_forward.1} parent=1 // pred_check_branch
      %863 = sbr.rel (0) target = $region17
    $region16: #{codebook_forward.1} parent=1 // pred_region
      %s865 = ssub.s32 2048, 2048
      %866 = vsyncadd [#allocation3], %s865
      %s867 = sshll.u32 [#allocation2], 4
      %s868 = int_to_ptr.vmem [resolvable:$true] %s867
      %873 = dma.vmem_to_hbm [thread:$0]  %s868, 2048, %s3, [#allocation3], 128, 128, 8
    $region17: #{codebook_forward.1} parent=1 // pred_fallthru
      _
    // Predicated region
    $region18: #{codebook_forward.1} parent=1 // pred_check
      _
    $region19: #{codebook_forward.1} parent=1 // pred_check_branch
      %875 = sbr.rel (0) target = $region21
    $region20: #{codebook_forward.1} parent=1 // pred_region
      %s877 = ssub.s32 16, 16
      %878 = vsyncadd [#allocation5], %s877
      %s880 = sshll.u32 [#allocation4], 4
      %s881 = int_to_ptr.vmem [resolvable:$true] %s880
      %883 = dma.vmem_to_hbm [thread:$0]  %s881, 16, %s4, [#allocation5]
    $region21: #{codebook_forward.1} parent=1 // pred_fallthru
      _
    // Predicated region
    $region22: #{codebook_forward.1} parent=1 // pred_check
      _
    $region23: #{codebook_forward.1} parent=1 // pred_check_branch
      %885 = sbr.rel (0) target = $region25
    $region24: #{codebook_forward.1} parent=1 // pred_region
      _
    $region25: #{codebook_forward.1} parent=1 // pred_fallthru
      _
    // Predicated region
    $region26: #{codebook_forward.1} parent=1 // pred_check
      _
    $region27: #{codebook_forward.1} parent=1 // pred_check_branch
      %887 = sbr.rel (0) target = $region29
    $region28: #{codebook_forward.1} parent=1 // pred_region
      %888 = dma.done [#allocation3], 2048
    $region29: #{codebook_forward.1} parent=1 // pred_fallthru
      _
    // Predicated region
    $region30: #{codebook_forward.1} parent=1 // pred_check
      _
    $region31: #{codebook_forward.1} parent=1 // pred_check_branch
      %890 = sbr.rel (0) target = $region33
    $region32: #{codebook_forward.1} parent=1 // pred_region
      %891 = dma.done [#allocation5], 16
    $region33: #{codebook_forward.1} parent=1 // pred_fallthru
      _
    // Predicated region
    $region34: #{codebook_forward.1} parent=1 // pred_check
      _
    $region35: #{codebook_forward.1} parent=1 // pred_check_branch
      %893 = sbr.rel (0) target = $region37
    $region36: #{codebook_forward.1} parent=1 // pred_region
      _
    $region37: #{codebook_forward.1} parent=1 // pred_fallthru
      _
    %894 = vsyncpa [#allocation3], 1
    %895 = vsyncpa [#allocation5], 1

</llo_original>
